<compile_context>
chip_gen: v6e
topology: v6e:2x2x1
jax: 0.10.0
libtpu: 0.0.40
codegen_flags: <defaults>
</compile_context>

<pallas_src>
import functools

import jax
import jax.numpy as jnp
from jax.experimental import pallas as pl
from jax.experimental.pallas import tpu as pltpu

LANE = 128
SUBLANE = 8
NEG_INF_BIAS = -1e30          # sentinel bias for padded logit columns (f32-safe)


def _round_up(n, m):
    return (n + m - 1) // m * m


def _pick_block_rows(batch, block_rows=256):
    """Batch tile: multiple of 8, <= block_rows, ~batch/2 so a v7x megacore gets
    >= 2 'parallel' tiles when the batch is large enough."""
    half = _round_up(max(1, (batch + 1) // 2), SUBLANE)
    return max(SUBLANE, min(block_rows, half))


def _time_chunk(T, max_chunk=8):
    """Largest divisor of T that is <= max_chunk (static unroll factor)."""
    for c in range(min(max_chunk, T), 0, -1):
        if T % c == 0:
            return c
    return 1


# ----------------------------------------------------------------------------
# Single-step kernel (mirrors RNN.forward(input, hidden)).
# x / hidden arrive with their natural feature widths (I, H); weights are
# lane-padded + bf16; outputs are lane-padded so every store is lane-dense.
# ----------------------------------------------------------------------------
def rnn_step_kernel(x_ref, h_ref, wi_ref, wh_ref, bh_ref, wo_ref, bo_ref,
                    out_ref, hnew_ref):
    x_b = x_ref[...].astype(jnp.bfloat16)
    h_b = h_ref[...].astype(jnp.bfloat16)

    # hidden = tanh(x @ Wi + h @ Wh + (bi + bh)) -- two bf16 MXU dots, f32 accum.
    acc = (jnp.dot(x_b, wi_ref[...], preferred_element_type=jnp.float32)
           + jnp.dot(h_b, wh_ref[...], preferred_element_type=jnp.float32)
           + bh_ref[...])
    h_new = jnp.tanh(acc)

    # output = log_softmax(hidden @ Wo + bo); padded logit columns hold -1e30.
    logits = (jnp.dot(h_new.astype(jnp.bfloat16), wo_ref[...],
                      preferred_element_type=jnp.float32) + bo_ref[...])
    m = jnp.max(logits, axis=1, keepdims=True)
    shifted = logits - m
    lse = jnp.log(jnp.sum(jnp.exp(shifted), axis=1, keepdims=True))

    out_ref[...] = (shifted - lse).astype(out_ref.dtype)
    hnew_ref[...] = h_new.astype(hnew_ref.dtype)


# ----------------------------------------------------------------------------
# Full-sequence kernel: recurrence stays on-chip.
# grid = (batch_tiles [parallel], time_chunks [arbitrary]); the hidden carry is
# a persistent bf16 VMEM scratch; hfin is written once, at the last chunk.
# ----------------------------------------------------------------------------
def rnn_seq_kernel(x_ref, h0_ref, wi_ref, wh_ref, bh_ref, wo_ref, bo_ref,
                   out_ref, hfin_ref, carry_ref, *, tt):
    tc = pl.program_id(1)

    @pl.when(tc == 0)
    def _():
        carry_ref[...] = h0_ref[...].astype(carry_ref.dtype)

    wi = wi_ref[...]
    wh = wh_ref[...]
    wo = wo_ref[...]
    bh = bh_ref[...]
    bo = bo_ref[...]

    h_b = carry_ref[...]                        # (bm, Hp) bf16 carry
    h_f32 = None
    for t in range(tt):                         # static unroll (tt <= 8)
        x_b = x_ref[t].astype(jnp.bfloat16)     # (bm, I)
        acc = (jnp.dot(x_b, wi, preferred_element_type=jnp.float32)
               + jnp.dot(h_b, wh, preferred_element_type=jnp.float32)
               + bh)
        h_f32 = jnp.tanh(acc)
        h_b = h_f32.astype(jnp.bfloat16)

        logits = jnp.dot(h_b, wo, preferred_element_type=jnp.float32) + bo
        m = jnp.max(logits, axis=1, keepdims=True)
        shifted = logits - m
        lse = jnp.log(jnp.sum(jnp.exp(shifted), axis=1, keepdims=True))
        out_ref[t] = (shifted - lse).astype(out_ref.dtype)

    carry_ref[...] = h_b                        # carry to the next time chunk

    @pl.when(tc == pl.num_programs(1) - 1)
    def _():
        hfin_ref[...] = h_f32.astype(hfin_ref.dtype)


# ----------------------------------------------------------------------------
# Parameter preparation: lane-pad + bf16-cast once, reuse for every call.
# ----------------------------------------------------------------------------
def prepare_params(params):
    wi, bi = params["wi"], params["bi"]
    wh, bh = params["wh"], params["bh"]
    wo, bo = params["wo"], params["bo"]
    I, H = wi.shape
    O = wo.shape[1]
    Hp, Op = _round_up(H, LANE), _round_up(O, LANE)

    bf = jnp.bfloat16
    # Weights bf16 (MXU-native, halves resident VMEM + DMA bytes); biases f32.
    wi_b = jnp.zeros((I, Hp), bf).at[:, :H].set(wi.astype(bf))
    wh_step = jnp.zeros((H, Hp), bf).at[:, :H].set(wh.astype(bf))
    wh_seq = jnp.zeros((Hp, Hp), bf).at[:H, :H].set(wh.astype(bf))
    wo_b = jnp.zeros((Hp, Op), bf).at[:H, :O].set(wo.astype(bf))
    bh_p = jnp.zeros((1, Hp), jnp.float32).at[:, :H].set(bi + bh)
    # Padded logit columns get a huge negative bias -> exp() == 0 in softmax.
    bo_p = jnp.full((1, Op), NEG_INF_BIAS, jnp.float32).at[:, :O].set(bo)

    return dict(wi=wi_b, wh_step=wh_step, wh_seq=wh_seq, wo=wo_b,
                bh=bh_p, bo=bo_p,
                input_size=I, hidden_size=H, output_size=O, Hp=Hp, Op=Op)


# ----------------------------------------------------------------------------
# Single-step forward: mirrors RNN.forward(input, hidden) -> (output, hidden).
# ----------------------------------------------------------------------------
def rnn_forward(x, hidden, pp, block_rows=256):
    I, H, O = pp["input_size"], pp["hidden_size"], pp["output_size"]
    Hp, Op = pp["Hp"], pp["Op"]

    x = x.reshape(-1, I)                        # mirrors input.view(-1, input_size)
    batch = x.shape[0]
    if hidden.shape[0] != batch:                # mirrors broadcasting of (1, H) hidden
        hidden = jnp.broadcast_to(hidden, (batch, H))

    bm = _pick_block_rows(batch, block_rows)
    Bp = _round_up(batch, bm)
    if Bp != batch:                             # pad batch rows only (features unpadded)
        x = jnp.zeros((Bp, I), x.dtype).at[:batch].set(x)
        hidden = jnp.zeros((Bp, H), hidden.dtype).at[:batch].set(hidden)

    out_p, h_p = pl.pallas_call(
        rnn_step_kernel,
        out_shape=(
            jax.ShapeDtypeStruct((Bp, Op), jnp.float32),
            jax.ShapeDtypeStruct((Bp, Hp), jnp.float32),
        ),
        grid_spec=pltpu.PrefetchScalarGridSpec(
            num_scalar_prefetch=0,
            grid=(Bp // bm,),
            in_specs=[
                pl.BlockSpec((bm, I), lambda i: (i, 0)),     # activations stream
                pl.BlockSpec((bm, H), lambda i: (i, 0)),
                pl.BlockSpec((I, Hp), lambda i: (0, 0)),     # weights resident
                pl.BlockSpec((H, Hp), lambda i: (0, 0)),
                pl.BlockSpec((1, Hp), lambda i: (0, 0)),
                pl.BlockSpec((Hp, Op), lambda i: (0, 0)),
                pl.BlockSpec((1, Op), lambda i: (0, 0)),
            ],
            out_specs=(
                pl.BlockSpec((bm, Op), lambda i: (i, 0)),
                pl.BlockSpec((bm, Hp), lambda i: (i, 0)),
            ),
        ),
        compiler_params=pltpu.CompilerParams(
            dimension_semantics=("parallel",),
            vmem_limit_bytes=64 * 1024 * 1024,
        ),
    )(x, hidden, pp["wi"], pp["wh_step"], pp["bh"], pp["wo"], pp["bo"])

    return out_p[:batch, :O], h_p[:batch, :H]


# ----------------------------------------------------------------------------
# Whole-sequence forward: one pallas_call, recurrence + weights stay on-chip.
# xseq: (T, batch, input_size) -> (outputs (T, batch, O), final hidden).
# ----------------------------------------------------------------------------
def rnn_sequence_forward(xseq, h0, pp, block_rows=256, time_chunk=8):
    I, H, O = pp["input_size"], pp["hidden_size"], pp["output_size"]
    Hp, Op = pp["Hp"], pp["Op"]

    T, batch = xseq.shape[0], xseq.shape[1]
    if h0.shape[0] != batch:
        h0 = jnp.broadcast_to(h0, (batch, H))

    bm = _pick_block_rows(batch, block_rows)
    Bp = _round_up(batch, bm)
    TT = _time_chunk(T, time_chunk)

    if Bp != batch:                             # pad batch rows only; I stays unpadded
        xseq = jnp.zeros((T, Bp, I), xseq.dtype).at[:, :batch].set(xseq)
        h0 = jnp.zeros((Bp, H), h0.dtype).at[:batch].set(h0)
    # h0 lives lane-padded (Hp) so the carry init / final store are lane-dense.
    h0_p = jnp.zeros((Bp, Hp), jnp.float32).at[:, :H].set(h0)

    kernel = functools.partial(rnn_seq_kernel, tt=TT)

    out_p, hfin_p = pl.pallas_call(
        kernel,
        out_shape=(
            jax.ShapeDtypeStruct((T, Bp, Op), jnp.float32),
            jax.ShapeDtypeStruct((Bp, Hp), jnp.float32),
        ),
        grid_spec=pltpu.PrefetchScalarGridSpec(
            num_scalar_prefetch=0,
            grid=(Bp // bm, T // TT),           # time is the last (sequential) axis
            in_specs=[
                pl.BlockSpec((TT, bm, I), lambda b, tc: (tc, b, 0)),
                pl.BlockSpec((bm, Hp), lambda b, tc: (b, 0)),
                pl.BlockSpec((I, Hp), lambda b, tc: (0, 0)),   # weights resident for all t
                pl.BlockSpec((Hp, Hp), lambda b, tc: (0, 0)),
                pl.BlockSpec((1, Hp), lambda b, tc: (0, 0)),
                # TODO(synk): for large output vocabularies, stream wo over an extra
                # Op-tile grid axis instead of keeping it fully resident (v7x 64 MiB VMEM).
                pl.BlockSpec((Hp, Op), lambda b, tc: (0, 0)),
                pl.BlockSpec((1, Op), lambda b, tc: (0, 0)),
            ],
            out_specs=(
                pl.BlockSpec((TT, bm, Op), lambda b, tc: (tc, b, 0)),
                pl.BlockSpec((bm, Hp), lambda b, tc: (b, 0)),  # written once, last chunk
            ),
            scratch_shapes=[pltpu.VMEM((bm, Hp), jnp.bfloat16)],  # persistent hidden carry
        ),
        compiler_params=pltpu.CompilerParams(
            dimension_semantics=("parallel", "arbitrary"),
            vmem_limit_bytes=64 * 1024 * 1024,
        ),
    )(xseq, h0_p, pp["wi"], pp["wh_seq"], pp["bh"], pp["wo"], pp["bo"])

    return out_p[:, :batch, :O], hfin_p[:batch, :H]


# ----------------------------------------------------------------------------
# Init + pure-JAX references.
# ----------------------------------------------------------------------------
def init_params(key, input_size, hidden_size, output_size):
    """PyTorch-Linear-style init (uniform +-1/sqrt(fan_in)); weights stored (in, out)."""
    ks = jax.random.split(key, 6)

    def lin(kw, kb, fan_in, fan_out):
        bound = 1.0 / jnp.sqrt(fan_in)
        w = jax.random.uniform(kw, (fan_in, fan_out), jnp.float32, -bound, bound)
        b = jax.random.uniform(kb, (1, fan_out), jnp.float32, -bound, bound)
        return w, b

    wi, bi = lin(ks[0], ks[1], input_size, hidden_size)
    wh, bh = lin(ks[2], ks[3], hidden_size, hidden_size)
    wo, bo = lin(ks[4], ks[5], hidden_size, output_size)
    return dict(wi=wi, bi=bi, wh=wh, bh=bh, wo=wo, bo=bo)


def reference_forward(x, hidden, p, *, bf16_matmul=True):
    """bf16_matmul=True mirrors the kernel numerics (bf16 MXU dots, f32 accum);
    bf16_matmul=False is the full-f32 module semantics."""
    I, H = p["wi"].shape[0], p["wh"].shape[0]
    x = x.reshape(-1, I)
    if hidden.shape[0] != x.shape[0]:
        hidden = jnp.broadcast_to(hidden, (x.shape[0], H))

    if bf16_matmul:
        def dot(a, b):
            return jnp.dot(a.astype(jnp.bfloat16), b.astype(jnp.bfloat16),
                           preferred_element_type=jnp.float32)
    else:
        def dot(a, b):
            return jnp.dot(a, b, precision=jax.lax.Precision.HIGHEST)

    acc = dot(x, p["wi"]) + dot(hidden, p["wh"]) + (p["bi"] + p["bh"])
    h_new = jnp.tanh(acc)
    logits = dot(h_new, p["wo"]) + p["bo"]
    return jax.nn.log_softmax(logits, axis=1), h_new


def reference_sequence(xseq, h0, p, *, bf16_matmul=True):
    outs, h = [], h0
    for t in range(xseq.shape[0]):
        o, h = reference_forward(xseq[t], h, p, bf16_matmul=bf16_matmul)
        outs.append(o)
    return jnp.stack(outs, axis=0), h


if __name__ == "__main__":
    input_size, hidden_size, output_size = 16, 32, 8
    batch, seq_len = 2, 8

    key = jax.random.PRNGKey(0)
    kx, ks, kp = jax.random.split(key, 3)
    x = jax.random.normal(kx, (batch, input_size), jnp.float32)
    xseq = jax.random.normal(ks, (seq_len, batch, input_size), jnp.float32)
    hidden0 = jnp.zeros((batch, hidden_size), jnp.float32)   # like initHidden per row

    params = init_params(kp, input_size, hidden_size, output_size)
    prepped = prepare_params(params)

    # --- single step (the module's forward) ---
    out, h_new = rnn_forward(x, hidden0, prepped)
    out, h_new = jax.block_until_ready((out, h_new))

    out_ref, h_ref = reference_forward(x, hidden0, params)   # kernel-numerics reference
    assert jnp.allclose(out, out_ref, atol=2e-3, rtol=2e-3), "step output mismatch"
    assert jnp.allclose(h_new, h_ref, atol=2e-3, rtol=2e-3), "step hidden mismatch"

    out_hi, h_hi = reference_forward(x, hidden0, params, bf16_matmul=False)  # f32 semantics
    assert jnp.allclose(out, out_hi, atol=5e-2, rtol=5e-2), "step output far from f32 reference"
    assert jnp.allclose(h_new, h_hi, atol=5e-2, rtol=5e-2), "step hidden far from f32 reference"

    # --- full sequence in one kernel launch (recurrence stays on-chip) ---
    seq_out, seq_h = rnn_sequence_forward(xseq, hidden0, prepped)
    seq_out, seq_h = jax.block_until_ready((seq_out, seq_h))

    seq_out_ref, seq_h_ref = reference_sequence(xseq, hidden0, params)
    assert jnp.allclose(seq_out, seq_out_ref, atol=2e-3, rtol=2e-3), "seq output mismatch"
    assert jnp.allclose(seq_h, seq_h_ref, atol=2e-3, rtol=2e-3), "seq hidden mismatch"

    print("KERNEL_OK")
</pallas_src>

<mosaic_0001>
module attributes {stable_mosaic.version = 11 : i64} {
  func.func @rnn_step_kernel(%arg0: i32, %arg1: memref<8x16xf32, #tpu.memory_space<vmem>>, %arg2: memref<8x32xf32, #tpu.memory_space<vmem>>, %arg3: memref<16x128xbf16, #tpu.memory_space<vmem>>, %arg4: memref<32x128xbf16, #tpu.memory_space<vmem>>, %arg5: memref<1x128xf32, #tpu.memory_space<vmem>>, %arg6: memref<128x128xbf16, #tpu.memory_space<vmem>>, %arg7: memref<1x128xf32, #tpu.memory_space<vmem>>, %arg8: memref<8x128xf32, #tpu.memory_space<vmem>>, %arg9: memref<8x128xf32, #tpu.memory_space<vmem>>) attributes {dimension_semantics = [#tpu.dimension_semantics<parallel>], iteration_bounds = array<i64: 1>, scalar_prefetch = 0 : i64, scratch_operands = 0 : i64, tpu.core_type = #tpu.core_type<tc>, window_params = [{transform_indices = @transform_0, window_bounds = array<i64: 8, 16>}, {transform_indices = @transform_1, window_bounds = array<i64: 8, 32>}, {pipeline_mode = #tpu.pipeline_mode<synchronous>, transform_indices = @transform_2, window_bounds = array<i64: 16, 128>}, {pipeline_mode = #tpu.pipeline_mode<synchronous>, transform_indices = @transform_3, window_bounds = array<i64: 32, 128>}, {pipeline_mode = #tpu.pipeline_mode<synchronous>, transform_indices = @transform_4, window_bounds = array<i64: 1, 128>}, {pipeline_mode = #tpu.pipeline_mode<synchronous>, transform_indices = @transform_5, window_bounds = array<i64: 128, 128>}, {pipeline_mode = #tpu.pipeline_mode<synchronous>, transform_indices = @transform_6, window_bounds = array<i64: 1, 128>}, {transform_indices = @transform_7, window_bounds = array<i64: 8, 128>}, {transform_indices = @transform_8, window_bounds = array<i64: 8, 128>}]} {
    %c0 = arith.constant 0 : index
    %c0_0 = arith.constant 0 : index
    %0 = vector.load %arg1[%c0, %c0_0] : memref<8x16xf32, #tpu.memory_space<vmem>>, vector<8x16xf32>
    %1 = arith.truncf %0 : vector<8x16xf32> to vector<8x16xbf16>
    %c0_1 = arith.constant 0 : index
    %c0_2 = arith.constant 0 : index
    %2 = vector.load %arg2[%c0_1, %c0_2] : memref<8x32xf32, #tpu.memory_space<vmem>>, vector<8x32xf32>
    %3 = arith.truncf %2 : vector<8x32xf32> to vector<8x32xbf16>
    %c0_3 = arith.constant 0 : index
    %c0_4 = arith.constant 0 : index
    %4 = vector.load %arg3[%c0_3, %c0_4] : memref<16x128xbf16, #tpu.memory_space<vmem>>, vector<16x128xbf16>
    %cst = arith.constant dense<0.000000e+00> : vector<8x128xf32>
    %5 = tpu.matmul %1, %4, %cst {dimension_numbers = #tpu.dot_dimension_numbers<[1], [0], [0], [1], [0, 0, 1, 1], [], []>} : vector<8x16xbf16>, vector<16x128xbf16>, vector<8x128xf32> -> vector<8x128xf32>
    %c0_5 = arith.constant 0 : index
    %c0_6 = arith.constant 0 : index
    %6 = vector.load %arg4[%c0_5, %c0_6] : memref<32x128xbf16, #tpu.memory_space<vmem>>, vector<32x128xbf16>
    %cst_7 = arith.constant dense<0.000000e+00> : vector<8x128xf32>
    %7 = tpu.matmul %3, %6, %cst_7 {dimension_numbers = #tpu.dot_dimension_numbers<[1], [0], [0], [1], [0, 0, 1, 1], [], []>} : vector<8x32xbf16>, vector<32x128xbf16>, vector<8x128xf32> -> vector<8x128xf32>
    %8 = arith.addf %5, %7 : vector<8x128xf32>
    %c0_8 = arith.constant 0 : index
    %c0_9 = arith.constant 0 : index
    %9 = vector.load %arg5[%c0_8, %c0_9] : memref<1x128xf32, #tpu.memory_space<vmem>>, vector<1x128xf32>
    %10 = vector.broadcast %9 : vector<1x128xf32> to vector<8x128xf32>
    %11 = arith.addf %8, %10 : vector<8x128xf32>
    %12 = math.tanh %11 : vector<8x128xf32>
    %13 = arith.truncf %12 : vector<8x128xf32> to vector<8x128xbf16>
    %c0_10 = arith.constant 0 : index
    %c0_11 = arith.constant 0 : index
    %14 = vector.load %arg6[%c0_10, %c0_11] : memref<128x128xbf16, #tpu.memory_space<vmem>>, vector<128x128xbf16>
    %cst_12 = arith.constant dense<0.000000e+00> : vector<8x128xf32>
    %15 = tpu.matmul %13, %14, %cst_12 {dimension_numbers = #tpu.dot_dimension_numbers<[1], [0], [0], [1], [0, 0, 1, 1], [], []>} : vector<8x128xbf16>, vector<128x128xbf16>, vector<8x128xf32> -> vector<8x128xf32>
    %c0_13 = arith.constant 0 : index
    %c0_14 = arith.constant 0 : index
    %16 = vector.load %arg7[%c0_13, %c0_14] : memref<1x128xf32, #tpu.memory_space<vmem>>, vector<1x128xf32>
    %17 = vector.broadcast %16 : vector<1x128xf32> to vector<8x128xf32>
    %18 = arith.addf %15, %17 : vector<8x128xf32>
    %cst_15 = arith.constant dense<0xFF800000> : vector<8xf32>
    %19 = vector.multi_reduction <maximumf>, %18, %cst_15 [1] : vector<8x128xf32> to vector<8xf32>
    %20 = vector.shape_cast %19 : vector<8xf32> to vector<8x1xf32>
    %21 = vector.broadcast %20 : vector<8x1xf32> to vector<8x128xf32>
    %22 = arith.subf %18, %21 : vector<8x128xf32>
    %23 = math.exp %22 : vector<8x128xf32>
    %cst_16 = arith.constant dense<0.000000e+00> : vector<8xf32>
    %24 = vector.multi_reduction <add>, %23, %cst_16 [1] : vector<8x128xf32> to vector<8xf32>
    %25 = vector.shape_cast %24 : vector<8xf32> to vector<8x1xf32>
    %26 = math.log %25 : vector<8x1xf32>
    %27 = vector.broadcast %26 : vector<8x1xf32> to vector<8x128xf32>
    %28 = arith.subf %22, %27 : vector<8x128xf32>
    %c0_17 = arith.constant 0 : index
    %c0_18 = arith.constant 0 : index
    %29 = vector.load %arg8[%c0_17, %c0_18] : memref<8x128xf32, #tpu.memory_space<vmem>>, vector<8x128xf32>
    tpu.vector_store %arg8[%c0_17, %c0_18], %28 {strides = array<i32>} : memref<8x128xf32, #tpu.memory_space<vmem>>, vector<8x128xf32>,
    %c0_19 = arith.constant 0 : index
    %c0_20 = arith.constant 0 : index
    %30 = vector.load %arg9[%c0_19, %c0_20] : memref<8x128xf32, #tpu.memory_space<vmem>>, vector<8x128xf32>
    tpu.vector_store %arg9[%c0_19, %c0_20], %12 {strides = array<i32>} : memref<8x128xf32, #tpu.memory_space<vmem>>, vector<8x128xf32>,
    return
  }
  func.func @transform_0(%arg0: i32) -> (i32, i32) {
    %c0_i32 = arith.constant 0 : i32
    %c0_i32_0 = arith.constant 0 : i32
    return %arg0, %c0_i32 : i32, i32
  }
  func.func @transform_1(%arg0: i32) -> (i32, i32) {
    %c0_i32 = arith.constant 0 : i32
    %c0_i32_0 = arith.constant 0 : i32
    return %arg0, %c0_i32 : i32, i32
  }
  func.func @transform_2(%arg0: i32) -> (i32, i32) {
    %c0_i32 = arith.constant 0 : i32
    %c0_i32_0 = arith.constant 0 : i32
    %c0_i32_1 = arith.constant 0 : i32
    return %c0_i32, %c0_i32_0 : i32, i32
  }
  func.func @transform_3(%arg0: i32) -> (i32, i32) {
    %c0_i32 = arith.constant 0 : i32
    %c0_i32_0 = arith.constant 0 : i32
    %c0_i32_1 = arith.constant 0 : i32
    return %c0_i32, %c0_i32_0 : i32, i32
  }
  func.func @transform_4(%arg0: i32) -> (i32, i32) {
    %c0_i32 = arith.constant 0 : i32
    %c0_i32_0 = arith.constant 0 : i32
    %c0_i32_1 = arith.constant 0 : i32
    return %c0_i32, %c0_i32_0 : i32, i32
  }
  func.func @transform_5(%arg0: i32) -> (i32, i32) {
    %c0_i32 = arith.constant 0 : i32
    %c0_i32_0 = arith.constant 0 : i32
    %c0_i32_1 = arith.constant 0 : i32
    return %c0_i32, %c0_i32_0 : i32, i32
  }
  func.func @transform_6(%arg0: i32) -> (i32, i32) {
    %c0_i32 = arith.constant 0 : i32
    %c0_i32_0 = arith.constant 0 : i32
    %c0_i32_1 = arith.constant 0 : i32
    return %c0_i32, %c0_i32_0 : i32, i32
  }
  func.func @transform_7(%arg0: i32) -> (i32, i32) {
    %c0_i32 = arith.constant 0 : i32
    %c0_i32_0 = arith.constant 0 : i32
    return %arg0, %c0_i32 : i32, i32
  }
  func.func @transform_8(%arg0: i32) -> (i32, i32) {
    %c0_i32 = arith.constant 0 : i32
    %c0_i32_0 = arith.constant 0 : i32
    return %arg0, %c0_i32 : i32, i32
  }
}

</mosaic_0001>

<llo_original>
// kernel: tpu_custom_call.1
$region0: #{tpu_custom_call.1}
  #allocation0 [shape = 'u32[]', space=smem, size = 0x4, offset = 0x4, fixed_abs, tag = 'smem constant byte address 0x4 - core index']
  #allocation1 [shape = 'u32[144,128]{1,0:T(1,128)}', space=vmem, size = 0x12000, scoped, tag = 'internal scratch']
  %s0 = inlined_call_operand.hbm [shape: f32[8,16], index: 0, kind: input, shape index: {}]
  %s1 = inlined_call_operand.hbm [shape: f32[8,32], index: 1, kind: input, shape index: {}]
  %s2 = inlined_call_operand.hbm [shape: bf16[16,128], index: 2, kind: input, shape index: {}]
  %s3 = inlined_call_operand.hbm [shape: bf16[32,128], index: 3, kind: input, shape index: {}]
  %s4 = inlined_call_operand.vmem [shape: f32[1,128], index: 4, kind: input, shape index: {}]
  %s5 = inlined_call_operand.hbm [shape: bf16[128,128], index: 5, kind: input, shape index: {}]
  %s6 = inlined_call_operand.vmem [shape: f32[1,128], index: 6, kind: input, shape index: {}]
  %s7 = inlined_call_operand.hbm [shape: f32[8,128], index: 7, kind: output, shape index: {0}]
  %s8 = inlined_call_operand.hbm [shape: f32[8,128], index: 8, kind: output, shape index: {1}]
  %9 = xla_tuple %s7, %s8
  %s10 = sld [smem:[#allocation0]]
  $region66: #{tpu_custom_call.1} parent=0
    _
  %s12 = ssub.s32 1, %s10
  %s13 = scalar_select 0, %s12, %s10
  $region1: #{tpu_custom_call.1} parent=0
    #allocation2 [shape = 'u8[4096]{0}', space=vmem, size = 0x1000, scoped, tag = 'input window, operand 0, single buffered']
    #allocation3 [shape = 's32[1]{0}', space=sflag, size = 0x4, scoped, tag = 'scoped memory for tpu_custom_call.1']
    #allocation4 [shape = 's32[1]{0}', space=sflag, size = 0x4, scoped, tag = 'scoped memory for tpu_custom_call.1']
    #allocation5 [shape = 'u8[4096]{0}', space=vmem, size = 0x1000, scoped, tag = 'input window, operand 1, single buffered']
    #allocation6 [shape = 's32[1]{0}', space=sflag, size = 0x4, scoped, tag = 'scoped memory for tpu_custom_call.1']
    #allocation7 [shape = 'u8[4096]{0}', space=vmem, size = 0x1000, scoped, tag = 'input window, operand 2, single buffered']
    #allocation8 [shape = 'u8[8192]{0}', space=vmem, size = 0x2000, scoped, tag = 'input window, operand 3, single buffered']
    #allocation9 [shape = 's32[1]{0}', space=sflag, size = 0x4, scoped, tag = 'scoped memory for tpu_custom_call.1']
    #allocation10 [shape = 'u8[32768]{0}', space=vmem, size = 0x8000, scoped, tag = 'input window, operand 5, single buffered']
    #allocation11 [shape = 'u8[4096]{0}', space=vmem, size = 0x1000, scoped, tag = 'output window, operand 0, single buffered']
    #allocation12 [shape = 'u8[4096]{0}', space=vmem, size = 0x1000, scoped, tag = 'output window, operand 1, single buffered']
    #allocation13 [shape = 's32[1]{0}', space=sflag, size = 0x4, scoped, tag = 'scoped memory for tpu_custom_call.1']
    %14 = vsyncpa [#allocation3], 0
    %15 = vsyncpa [#allocation6], 0
    %16 = vsyncpa [#allocation9], 0
    %17 = vsyncpa [#allocation4], 0
    %18 = vsyncpa [#allocation13], 0
    // Predicated region
    $region2: #{tpu_custom_call.1} parent=1 // pred_check
      _
    $region3: #{tpu_custom_call.1} parent=1 // pred_check_branch
      %20 = sbr.rel (0) target = $region5
    $region4: #{tpu_custom_call.1} parent=1 // pred_region
      %s22 = ssub.s32 128, 128
      %23 = vsyncadd [#allocation3], %s22
      %s25 = sshll.u32 [#allocation2], 4
      %s26 = int_to_ptr.vmem [resolvable:$true] %s25
      %28 = dma.hbm_to_vmem [thread:$0]  %s0, 128, %s26, [#allocation3]
    $region5: #{tpu_custom_call.1} parent=1 // pred_fallthru
      _
    // Predicated region
    $region6: #{tpu_custom_call.1} parent=1 // pred_check
      _
    $region7: #{tpu_custom_call.1} parent=1 // pred_check_branch
      %30 = sbr.rel (0) target = $region9
    $region8: #{tpu_custom_call.1} parent=1 // pred_region
      %s32 = ssub.s32 128, 128
      %33 = vsyncadd [#allocation6], %s32
      %s35 = sshll.u32 [#allocation5], 4
      %s36 = int_to_ptr.vmem [resolvable:$true] %s35
      %38 = dma.hbm_to_vmem [thread:$0]  %s1, 128, %s36, [#allocation6]
    $region9: #{tpu_custom_call.1} parent=1 // pred_fallthru
      _
    // Predicated region
    $region10: #{tpu_custom_call.1} parent=1 // pred_check
      _
    $region11: #{tpu_custom_call.1} parent=1 // pred_check_branch
      %40 = sbr.rel (0) target = $region13
    $region12: #{tpu_custom_call.1} parent=1 // pred_region
      %s42 = ssub.s32 128, 128
      %43 = vsyncadd [#allocation6], %s42
      %s44 = sshll.u32 [#allocation7], 4
      %s45 = int_to_ptr.vmem [resolvable:$true] %s44
      %50 = dma.hbm_to_vmem [thread:$0]  %s2, 128, %s45, [#allocation6], 64, 64, 4
    $region13: #{tpu_custom_call.1} parent=1 // pred_fallthru
      _
    // Predicated region
    $region14: #{tpu_custom_call.1} parent=1 // pred_check
      _
    $region15: #{tpu_custom_call.1} parent=1 // pred_check_branch
      %52 = sbr.rel (0) target = $region17
    $region16: #{tpu_custom_call.1} parent=1 // pred_region
      %s54 = ssub.s32 256, 256
      %55 = vsyncadd [#allocation9], %s54
      %s56 = sshll.u32 [#allocation8], 4
      %s57 = int_to_ptr.vmem [resolvable:$true] %s56
      %62 = dma.hbm_to_vmem [thread:$0]  %s3, 256, %s57, [#allocation9], 64, 64, 4
    $region17: #{tpu_custom_call.1} parent=1 // pred_fallthru
      _
    // Predicated region
    $region18: #{tpu_custom_call.1} parent=1 // pred_check
      _
    $region19: #{tpu_custom_call.1} parent=1 // pred_check_branch
      %64 = sbr.rel (0) target = $region21
    $region20: #{tpu_custom_call.1} parent=1 // pred_region
      _
    $region21: #{tpu_custom_call.1} parent=1 // pred_fallthru
      _
    // Predicated region
    $region22: #{tpu_custom_call.1} parent=1 // pred_check
      _
    $region23: #{tpu_custom_call.1} parent=1 // pred_check_branch
      %66 = sbr.rel (0) target = $region25
    $region24: #{tpu_custom_call.1} parent=1 // pred_region
      %s68 = ssub.s32 1024, 1024
      %69 = vsyncadd [#allocation9], %s68
      %s70 = sshll.u32 [#allocation10], 4
      %s71 = int_to_ptr.vmem [resolvable:$true] %s70
      %76 = dma.hbm_to_vmem [thread:$0]  %s5, 1024, %s71, [#allocation9], 64, 64, 4
    $region25: #{tpu_custom_call.1} parent=1 // pred_fallthru
      _
    // Predicated region
    $region26: #{tpu_custom_call.1} parent=1 // pred_check
      _
    $region27: #{tpu_custom_call.1} parent=1 // pred_check_branch
      %78 = sbr.rel (0) target = $region29
    $region28: #{tpu_custom_call.1} parent=1 // pred_region
      _
    $region29: #{tpu_custom_call.1} parent=1 // pred_fallthru
      _
    // Predicated region
    $region30: #{tpu_custom_call.1} parent=1 // pred_check
      _
    $region31: #{tpu_custom_call.1} parent=1 // pred_check_branch
      %80 = sbr.rel (0) target = $region33
    $region32: #{tpu_custom_call.1} parent=1 // pred_region
      %81 = dma.done [#allocation3], 128
    $region33: #{tpu_custom_call.1} parent=1 // pred_fallthru
      _
    // Predicated region
    $region34: #{tpu_custom_call.1} parent=1 // pred_check
      _
    $region35: #{tpu_custom_call.1} parent=1 // pred_check_branch
      %83 = sbr.rel (0) target = $region37
    $region36: #{tpu_custom_call.1} parent=1 // pred_region
      %84 = dma.done [#allocation6], 128
    $region37: #{tpu_custom_call.1} parent=1 // pred_fallthru
      _
    // Predicated region
    $region38: #{tpu_custom_call.1} parent=1 // pred_check
      _
    $region39: #{tpu_custom_call.1} parent=1 // pred_check_branch
      %86 = sbr.rel (0) target = $region41
    $region40: #{tpu_custom_call.1} parent=1 // pred_region
      %87 = dma.done [#allocation6], 128
    $region41: #{tpu_custom_call.1} parent=1 // pred_fallthru
      _
    // Predicated region
    $region42: #{tpu_custom_call.1} parent=1 // pred_check
      _
    $region43: #{tpu_custom_call.1} parent=1 // pred_check_branch
      %89 = sbr.rel (0) target = $region45
    $region44: #{tpu_custom_call.1} parent=1 // pred_region
      %90 = dma.done [#allocation9], 256
    $region45: #{tpu_custom_call.1} parent=1 // pred_fallthru
      _
    // Predicated region
    $region46: #{tpu_custom_call.1} parent=1 // pred_check
      _
    $region47: #{tpu_custom_call.1} parent=1 // pred_check_branch
      %92 = sbr.rel (0) target = $region49
    $region48: #{tpu_custom_call.1} parent=1 // pred_region
      %93 = dma.done [#allocation9], 1024
    $region49: #{tpu_custom_call.1} parent=1 // pred_fallthru
      _
    %v95 = vld [vmem:[#allocation2] sm:$0xff]
    %v96 = vpack.c.bf16 %v95, %v95
    %v97 = vld [vmem:[#allocation5] sm:$0xff]
    %v98 = vpack.c.bf16 %v97, %v97
    %v99 = vld [vmem:[#allocation7] sm:$0xf]
    %v100 = vld [vmem:[#allocation7 + $0x4] sm:$0xf]
    %v101 = vld [vmem:[#allocation8] sm:$0xf]
    %v102 = vld [vmem:[#allocation8 + $0x4] sm:$0xf]
    %v103 = vld [vmem:[#allocation8 + $0x8] sm:$0xf]
    %v104 = vld [vmem:[#allocation8 + $0xc] sm:$0xf]
    %v109 = vunpack.c.l.b16 %v101
    %v110 = vunpack.c.l.b16 %v102
    %v111 = vunpack.c.l.b16 %v103
    %v112 = vunpack.c.l.b16 %v104
    %v113 = vpack.c.b16 %v110, %v109
    %v114 = vpack.c.b16 %v112, %v111
    %vm117 = vcmask 261120
    %v119 = vsel %vm117, %v98, 0
    %121 = vmatprep.subr.bf16.mxu0 0
    %122 = vmatpush1.bf16.msra.mxu0 0
    %123 = vmatprep.subr.bf16.mxu0 0
    %124 = vmatpush1.bf16.msra.mxu0 0
    %125 = vmatprep.subr.bf16.mxu0 0
    %126 = vmatpush1.bf16.msra.mxu0 0
    %127 = vmatprep.subr.bf16.mxu0 0
    %128 = vmatpush1.bf16.msra.mxu0 0
    %129 = vmatprep.subr.bf16.mxu0 0
    %130 = vmatpush1.bf16.msra.mxu0 0
    %131 = vmatprep.subr.bf16.mxu0 0
    %132 = vmatpush1.bf16.msra.mxu0 0
    %133 = vmatprep.subr.bf16.mxu0 0
    %134 = vmatpush1.bf16.msra.mxu0 %v114
    %135 = vmatprep.subr.bf16.mxu0 0
    %136 = vmatpush1.bf16.msra.mxu0 %v113
    %137 = vmatprep.subr.bf16.mxu0 0
    %138 = vmatpush2.bf16.msra.mxu0 0
    %139 = vmatprep.subr.bf16.mxu0 0
    %140 = vmatpush2.bf16.msra.mxu0 0
    %141 = vmatprep.subr.bf16.mxu0 0
    %142 = vmatpush2.bf16.msra.mxu0 0
    %143 = vmatprep.subr.bf16.mxu0 0
    %144 = vmatpush2.bf16.msra.mxu0 0
    %145 = vmatprep.subr.bf16.mxu0 0
    %146 = vmatpush2.bf16.msra.mxu0 0
    %147 = vmatprep.subr.bf16.mxu0 0
    %148 = vmatpush2.bf16.msra.mxu0 0
    %149 = vmatprep.subr.bf16.mxu0 0
    %150 = vmatpush2.bf16.msra.mxu0 0
    %151 = vmatprep.subr.bf16.mxu0 0
    %152 = vmatpush2.bf16.msra.mxu0 0
    %153 = vmatprep.mubr.bf16.mxu0 0
    %154 = vmatmul.mubr.bf16.gmra.mxu0 %v119
    %v155 = vpop.f32.mrf.mxu0
    %v156 = vadd.f32 0.0, %v155
    %v157 = vpop.f32.mrf.mxu0
    %v158 = vpop.f32.mrf.mxu0
    %v159 = vpop.f32.mrf.mxu0
    %160 = vdwg.mxu0
    %v163 = vunpack.c.l.b16 %v99
    %v164 = vunpack.c.l.b16 %v100
    %v165 = vpack.c.b16 %v164, %v163
    %vm167 = vcmask 130048
    %v169 = vsel %vm167, %v96, 0
    %171 = vmatprep.subr.bf16.mxu0 0
    %172 = vmatpush1.bf16.msra.mxu0 0
    %173 = vmatprep.subr.bf16.mxu0 0
    %174 = vmatpush1.bf16.msra.mxu0 0
    %175 = vmatprep.subr.bf16.mxu0 0
    %176 = vmatpush1.bf16.msra.mxu0 0
    %177 = vmatprep.subr.bf16.mxu0 0
    %178 = vmatpush1.bf16.msra.mxu0 0
    %179 = vmatprep.subr.bf16.mxu0 0
    %180 = vmatpush1.bf16.msra.mxu0 0
    %181 = vmatprep.subr.bf16.mxu0 0
    %182 = vmatpush1.bf16.msra.mxu0 0
    %183 = vmatprep.subr.bf16.mxu0 0
    %184 = vmatpush1.bf16.msra.mxu0 0
    %185 = vmatprep.subr.bf16.mxu0 0
    %186 = vmatpush1.bf16.msra.mxu0 %v165
    %187 = vmatprep.subr.bf16.mxu0 0
    %188 = vmatpush2.bf16.msra.mxu0 0
    %189 = vmatprep.subr.bf16.mxu0 0
    %190 = vmatpush2.bf16.msra.mxu0 0
    %191 = vmatprep.subr.bf16.mxu0 0
    %192 = vmatpush2.bf16.msra.mxu0 0
    %193 = vmatprep.subr.bf16.mxu0 0
    %194 = vmatpush2.bf16.msra.mxu0 0
    %195 = vmatprep.subr.bf16.mxu0 0
    %196 = vmatpush2.bf16.msra.mxu0 0
    %197 = vmatprep.subr.bf16.mxu0 0
    %198 = vmatpush2.bf16.msra.mxu0 0
    %199 = vmatprep.subr.bf16.mxu0 0
    %200 = vmatpush2.bf16.msra.mxu0 0
    %201 = vmatprep.subr.bf16.mxu0 0
    %202 = vmatpush2.bf16.msra.mxu0 0
    %203 = vmatprep.mubr.bf16.mxu0 0
    %204 = vmatmul.mubr.bf16.gmra.mxu0 %v169
    %v205 = vpop.f32.mrf.mxu0
    %v206 = vadd.f32 %v156, %v205
    %v207 = vpop.f32.mrf.mxu0
    %v208 = vpop.f32.mrf.mxu0
    %v209 = vpop.f32.mrf.mxu0
    %210 = vdwg.mxu0
    %v211 = vld [vmem:[%s4] sm:$0x1]
    %v213 = vlaneseq
    %v214 = vshrl.u32 %v213, 7
    %v215 = vsub.s32 0, %v214
    %v216 = vrot.slane %v211, %v215
    %v218 = vadd.f32 %v206, %v216
    %v219 = vtanh.pop %v218
    %v220 = vpack.c.bf16 %v219, %v219
    %v221 = vld [vmem:[#allocation10] sm:$0xf]
    %v222 = vld [vmem:[#allocation10 + $0x4] sm:$0xf]
    %v223 = vld [vmem:[#allocation10 + $0x8] sm:$0xf]
    %v224 = vld [vmem:[#allocation10 + $0xc] sm:$0xf]
    %v225 = vld [vmem:[#allocation10 + $0x10] sm:$0xf]
    %v226 = vld [vmem:[#allocation10 + $0x14] sm:$0xf]
    %v227 = vld [vmem:[#allocation10 + $0x18] sm:$0xf]
    %v228 = vld [vmem:[#allocation10 + $0x1c] sm:$0xf]
    %v229 = vld [vmem:[#allocation10 + $0x20] sm:$0xf]
    %v230 = vld [vmem:[#allocation10 + $0x24] sm:$0xf]
    %v231 = vld [vmem:[#allocation10 + $0x28] sm:$0xf]
    %v232 = vld [vmem:[#allocation10 + $0x2c] sm:$0xf]
    %v233 = vld [vmem:[#allocation10 + $0x30] sm:$0xf]
    %v234 = vld [vmem:[#allocation10 + $0x34] sm:$0xf]
    %v235 = vld [vmem:[#allocation10 + $0x38] sm:$0xf]
    %v236 = vld [vmem:[#allocation10 + $0x3c] sm:$0xf]
    %v237 = vld [vmem:[%s6] sm:$0x1]
    %v239 = vlaneseq
    %v240 = vshrl.u32 %v239, 7
    %v241 = vsub.s32 0, %v240
    %v242 = vrot.slane %v237, %v241
    %v260 = vunpack.c.l.b16 %v221
    %v261 = vunpack.c.l.b16 %v222
    %v262 = vunpack.c.l.b16 %v223
    %v263 = vunpack.c.l.b16 %v224
    %v264 = vunpack.c.l.b16 %v225
    %v265 = vunpack.c.l.b16 %v226
    %v266 = vunpack.c.l.b16 %v227
    %v267 = vunpack.c.l.b16 %v228
    %v268 = vunpack.c.l.b16 %v229
    %v269 = vunpack.c.l.b16 %v230
    %v270 = vunpack.c.l.b16 %v231
    %v271 = vunpack.c.l.b16 %v232
    %v272 = vunpack.c.l.b16 %v233
    %v273 = vunpack.c.l.b16 %v234
    %v274 = vunpack.c.l.b16 %v235
    %v275 = vunpack.c.l.b16 %v236
    %v276 = vpack.c.b16 %v261, %v260
    %v277 = vpack.c.b16 %v263, %v262
    %v278 = vpack.c.b16 %v265, %v264
    %v279 = vpack.c.b16 %v267, %v266
    %v280 = vpack.c.b16 %v269, %v268
    %v281 = vpack.c.b16 %v271, %v270
    %v282 = vpack.c.b16 %v273, %v272
    %v283 = vpack.c.b16 %v275, %v274
    %292 = vmatprep.subr.bf16.mxu0 0
    %293 = vmatpush1.bf16.msra.mxu0 %v283
    %294 = vmatprep.subr.bf16.mxu0 0
    %295 = vmatpush1.bf16.msra.mxu0 %v282
    %296 = vmatprep.subr.bf16.mxu0 0
    %297 = vmatpush1.bf16.msra.mxu0 %v281
    %298 = vmatprep.subr.bf16.mxu0 0
    %299 = vmatpush1.bf16.msra.mxu0 %v280
    %300 = vmatprep.subr.bf16.mxu0 0
    %301 = vmatpush1.bf16.msra.mxu0 %v279
    %302 = vmatprep.subr.bf16.mxu0 0
    %303 = vmatpush1.bf16.msra.mxu0 %v278
    %304 = vmatprep.subr.bf16.mxu0 0
    %305 = vmatpush1.bf16.msra.mxu0 %v277
    %306 = vmatprep.subr.bf16.mxu0 0
    %307 = vmatpush1.bf16.msra.mxu0 %v276
    %308 = vmatprep.subr.bf16.mxu0 0
    %309 = vmatpush2.bf16.msra.mxu0 0
    %310 = vmatprep.subr.bf16.mxu0 0
    %311 = vmatpush2.bf16.msra.mxu0 0
    %312 = vmatprep.subr.bf16.mxu0 0
    %313 = vmatpush2.bf16.msra.mxu0 0
    %314 = vmatprep.subr.bf16.mxu0 0
    %315 = vmatpush2.bf16.msra.mxu0 0
    %316 = vmatprep.subr.bf16.mxu0 0
    %317 = vmatpush2.bf16.msra.mxu0 0
    %318 = vmatprep.subr.bf16.mxu0 0
    %319 = vmatpush2.bf16.msra.mxu0 0
    %320 = vmatprep.subr.bf16.mxu0 0
    %321 = vmatpush2.bf16.msra.mxu0 0
    %322 = vmatprep.subr.bf16.mxu0 0
    %323 = vmatpush2.bf16.msra.mxu0 0
    %324 = vmatprep.mubr.bf16.mxu0 0
    %325 = vmatmul.mubr.bf16.gmra.mxu0 %v220
    %v326 = vpop.f32.mrf.mxu0
    %v327 = vadd.f32 %v242, %v326
    %v328 = vpop.f32.mrf.mxu0
    %v329 = vpop.f32.mrf.mxu0
    %v330 = vpop.f32.mrf.mxu0
    %331 = vdwg.mxu0
    %332 = vmax.xlane.f32.xlu0 %v327
    %v333 = vpop.xlane.xlu0 %332
    %v334 = vsub.f32 %v327, %v333
    %v335 = vmul.f32 %v334, 1.442695
    %v336 = vpow.pop %v335
    %337 = vadd.xlane.f32.xlu0 %v336
    %v338 = vpop.xlane.xlu0 %337
    %v339 = vlog2.pop %v338
    %v340 = vmul.f32 %v339, 0.6931472
    %v341 = vsub.f32 %v334, %v340
    %342 = vst [vmem:[#allocation11] sm:$0xff] %v341
    %343 = vst [vmem:[#allocation12] sm:$0xff] %v219
    // Predicated region
    $region50: #{tpu_custom_call.1} parent=1 // pred_check
      _
    $region51: #{tpu_custom_call.1} parent=1 // pred_check_branch
      %345 = sbr.rel (0) target = $region53
    $region52: #{tpu_custom_call.1} parent=1 // pred_region
      %s347 = ssub.s32 128, 128
      %348 = vsyncadd [#allocation4], %s347
      %s350 = sshll.u32 [#allocation11], 4
      %s351 = int_to_ptr.vmem [resolvable:$true] %s350
      %353 = dma.vmem_to_hbm [thread:$0]  %s351, 128, %s7, [#allocation4]
    $region53: #{tpu_custom_call.1} parent=1 // pred_fallthru
      _
    // Predicated region
    $region54: #{tpu_custom_call.1} parent=1 // pred_check
      _
    $region55: #{tpu_custom_call.1} parent=1 // pred_check_branch
      %355 = sbr.rel (0) target = $region57
    $region56: #{tpu_custom_call.1} parent=1 // pred_region
      %s357 = ssub.s32 128, 128
      %358 = vsyncadd [#allocation13], %s357
      %s360 = sshll.u32 [#allocation12], 4
      %s361 = int_to_ptr.vmem [resolvable:$true] %s360
      %363 = dma.vmem_to_hbm [thread:$0]  %s361, 128, %s8, [#allocation13]
    $region57: #{tpu_custom_call.1} parent=1 // pred_fallthru
      _
    // Predicated region
    $region58: #{tpu_custom_call.1} parent=1 // pred_check
      _
    $region59: #{tpu_custom_call.1} parent=1 // pred_check_branch
      %365 = sbr.rel (0) target = $region61
    $region60: #{tpu_custom_call.1} parent=1 // pred_region
      %366 = dma.done [#allocation4], 128
    $region61: #{tpu_custom_call.1} parent=1 // pred_fallthru
      _
    // Predicated region
    $region62: #{tpu_custom_call.1} parent=1 // pred_check
      _
    $region63: #{tpu_custom_call.1} parent=1 // pred_check_branch
      %368 = sbr.rel (0) target = $region65
    $region64: #{tpu_custom_call.1} parent=1 // pred_region
      %369 = dma.done [#allocation13], 128
    $region65: #{tpu_custom_call.1} parent=1 // pred_fallthru
      _
    %370 = vsyncpa [#allocation3], 1
    %371 = vsyncpa [#allocation6], 1
    %372 = vsyncpa [#allocation9], 1
    %373 = vsyncpa [#allocation4], 1
    %374 = vsyncpa [#allocation13], 1

</llo_original>
